<compile_context>
chip_gen: v5e
topology: v5e:2x2
jax: 0.10.0
libtpu: 0.0.40
codegen_flags: <defaults>
</compile_context>

<pallas_src>
import math
from functools import partial

import jax
import jax.numpy as jnp
from jax.experimental import pallas as pl
from jax.experimental.pallas import tpu as pltpu


def _cdiv(a: int, b: int) -> int:
    return -(-a // b)


def _round_up(n: int, m: int) -> int:
    return ((n + m - 1) // m) * m


# ----------------------------------------------------------------------------
# Pallas kernel: Independent(Normal(loc, scale), 1).log_prob(x), batch-tiled.
# ----------------------------------------------------------------------------
def _indep_normal_logprob_kernel(x_ref, loc_ref, nis_ref, c_ref, out_ref):
    # x tile streamed in its storage dtype (f32 or bf16); cast in VMEM.
    x = x_ref[...].astype(jnp.float32)                 # (TB, D)
    # nis = sqrt(0.5) / scale, so z*z = 0.5 * ((x - loc) / scale)^2
    z = (x - loc_ref[...]) * nis_ref[...]              # (TB, D), VPU
    # Per-row event-dim reduction: VPU mul + XLU lane reduce (exact f32).
    s = jnp.sum(z * z, axis=-1, keepdims=True)         # (TB, 1)
    # Folded constant: -sum(log scale) - 0.5 * D * log(2*pi)  (SMEM scalar).
    out_ref[...] = c_ref[0] - s


@partial(jax.jit, static_argnames=("block_rows",))
def independent_normal_log_prob(x, loc, scale, *, block_rows=1024):
    """log_prob of Independent(Normal(loc, scale), 1) evaluated at x.

    x: (B, D) float32 or bfloat16 (bf16 is the preferred input dtype for
    throughput -- the kernel is HBM-bandwidth-bound); loc/scale: (D,).
    Returns (B,) float32, matching
    torch.distributions.Independent(Normal(loc, scale), 1).log_prob.
    """
    B, D = x.shape
    itemsize = jnp.dtype(x.dtype).itemsize

    loc2 = loc.astype(jnp.float32).reshape(1, D)
    scale_f32 = scale.astype(jnp.float32)
    nis2 = (math.sqrt(0.5) / scale_f32).reshape(1, D)   # -0.5 folded in
    c = (-jnp.sum(jnp.log(scale_f32))
         - 0.5 * D * math.log(2.0 * math.pi)).reshape(1).astype(jnp.float32)

    # --- D/dtype-aware batch-tile selection -------------------------------
    # Budget the single x tile at ~12 MiB so the double-buffered pair stays
    # around 24 MiB: safe on v5e/v6e/v7x scoped-VMEM and well under v7x's
    # 64 MiB physical VMEM.
    tile_budget = 12 * 1024 * 1024
    max_tb = max(128, (tile_budget // (D * itemsize)) // 128 * 128)
    tb = min(block_rows, max_tb)
    if B >= 256:
        # Ensure >= 2 grid steps so the "parallel" batch axis can shard across
        # both v7x TensorCores (needed to reach the full HBM roofline there).
        tb = min(tb, _round_up(_cdiv(B, 2), 128))
    if tb >= B:
        # Single block covering the whole batch exactly ("equal full dim"
        # satisfies the (8,128) block constraint for any B); no padding.
        tb = B
    else:
        tb = max(128, (tb // 128) * 128)
    n_tiles = _cdiv(B, tb)
    out_rows = n_tiles * tb  # output kept block-aligned; sliced to B below

    # Explicit scoped-VMEM limit with headroom (x double-buffer + out
    # double-buffer + resident loc/nis).
    need = 2 * tb * D * itemsize + 2 * tb * 4 + 4 * D * 4
    vmem_limit = int(min(max(need + (4 << 20), 24 << 20), 48 << 20))

    # TODO(synk): for very large event dims D (where even a 128-row tile
    # approaches the per-TC VMEM budget, especially on v7x's 64 MiB), add a
    # second ("arbitrary") grid axis over D with a VMEM f32 accumulator.
    # TODO(synk): for tiny per-tile sizes (< ~256 KiB), pipeline_mode=
    # pl.Buffered(3) on the x BlockSpec would hide the fixed per-step DMA
    # latency; omitted here since tiles are sized to be large.
    out = pl.pallas_call(
        _indep_normal_logprob_kernel,
        out_shape=jax.ShapeDtypeStruct((out_rows, 1), jnp.float32),
        grid=(n_tiles,),
        in_specs=[
            pl.BlockSpec((tb, D), lambda i: (i, 0)),   # x tile (pipelined;
                                                       # last block may be
                                                       # ragged -- junk rows
                                                       # only feed discarded
                                                       # output rows)
            pl.BlockSpec((1, D), lambda i: (0, 0)),    # loc (VMEM resident)
            pl.BlockSpec((1, D), lambda i: (0, 0)),    # nis (VMEM resident)
            pl.BlockSpec(memory_space=pltpu.MemorySpace.SMEM),  # folded const
        ],
        out_specs=pl.BlockSpec((tb, 1), lambda i: (i, 0)),
        compiler_params=pltpu.CompilerParams(
            dimension_semantics=("parallel",),
            vmem_limit_bytes=vmem_limit,
        ),
    )(x, loc2, nis2, c)
    return out[:B, 0]


# ----------------------------------------------------------------------------
# JAX analogue of the torch module
# ----------------------------------------------------------------------------
class _IndependentNormal:
    """Minimal distribution object returned by DistributionModule.forward()."""

    def __init__(self, loc, scale, reinterpreted_batch_ndims):
        self.loc = loc
        self.scale = scale
        self._rbn = reinterpreted_batch_ndims
        if reinterpreted_batch_ndims is None:
            self.event_shape = ()
        else:
            self.event_shape = tuple(loc.shape[-reinterpreted_batch_ndims:])

    def log_prob(self, x):
        if self._rbn is None:
            # Plain Normal log_prob (no event reduction).
            # TODO(synk): the non-Independent path is kept in plain JAX; the
            # Pallas kernel implements the to_event(1) hot path.
            z = (x - self.loc) / self.scale
            return (-0.5 * z * z - jnp.log(self.scale)
                    - 0.5 * math.log(2.0 * math.pi))
        return independent_normal_log_prob(x, self.loc, self.scale)


class DistributionModule:
    """JAX/Pallas analogue of stochproc `_DistributionModule`, specialised to a
    Normal base distribution (the abstract `_get_parameters` is realised with
    deterministic loc / scale parameters)."""

    def __init__(self, event_dim, reinterpreted_batch_ndims=1):
        self._reinterpreted_batch_ndims = reinterpreted_batch_ndims
        d = jnp.arange(event_dim, dtype=jnp.float32)
        self._loc = 0.01 * d - 0.5
        self._scale = 1.0 + 0.005 * d

    def _get_parameters(self):
        return {"loc": self._loc, "scale": self._scale}

    def forward(self):
        params = self._get_parameters()
        return _IndependentNormal(
            params["loc"], params["scale"], self._reinterpreted_batch_ndims
        )

    def build_distribution(self):
        return self.forward()

    @property
    def shape(self):
        return self.build_distribution().event_shape


# ----------------------------------------------------------------------------
# main
# ----------------------------------------------------------------------------
if __name__ == "__main__":
    B, D = 200, 128  # small shapes; B not a multiple of 128
    key = jax.random.PRNGKey(0)
    x = jax.random.normal(key, (B, D), dtype=jnp.float32)

    module = DistributionModule(event_dim=D, reinterpreted_batch_ndims=1)
    dist = module.build_distribution()

    lp = jax.block_until_ready(dist.log_prob(x))

    # Pure-JAX reference of Independent(Normal(loc, scale), 1).log_prob(x).
    z = (x - module._loc[None, :]) / module._scale[None, :]
    ref = jnp.sum(
        -0.5 * z * z - jnp.log(module._scale)[None, :]
        - 0.5 * math.log(2.0 * math.pi),
        axis=-1,
    )

    assert lp.shape == (B,)
    assert module.shape == (D,)
    assert jnp.allclose(lp, ref, rtol=1e-5, atol=1e-3), (
        float(jnp.max(jnp.abs(lp - ref))))

    # Exercise the multi-tile path with a ragged final block (no wrapper pad).
    lp_tiled = jax.block_until_ready(
        independent_normal_log_prob(x, module._loc, module._scale,
                                    block_rows=128))
    assert lp_tiled.shape == (B,)
    assert jnp.allclose(lp_tiled, ref, rtol=1e-5, atol=1e-3), (
        float(jnp.max(jnp.abs(lp_tiled - ref))))

    print("KERNEL_OK")
</pallas_src>

<mosaic_0001>
module attributes {stable_mosaic.version = 11 : i64} {
  func.func @_indep_normal_logprob_kernel(%arg0: i32, %arg1: memref<200x128xf32, #tpu.memory_space<vmem>>, %arg2: memref<1x128xf32, #tpu.memory_space<vmem>>, %arg3: memref<1x128xf32, #tpu.memory_space<vmem>>, %arg4: memref<1xf32, #tpu.memory_space<smem>>, %arg5: memref<200x1xf32, #tpu.memory_space<vmem>>) attributes {dimension_semantics = [#tpu.dimension_semantics<parallel>], iteration_bounds = array<i64: 1>, scalar_prefetch = 0 : i64, scratch_operands = 0 : i64, tpu.core_type = #tpu.core_type<tc>, window_params = [{transform_indices = @transform_0, window_bounds = array<i64: 200, 128>}, {pipeline_mode = #tpu.pipeline_mode<synchronous>, transform_indices = @transform_1, window_bounds = array<i64: 1, 128>}, {pipeline_mode = #tpu.pipeline_mode<synchronous>, transform_indices = @transform_2, window_bounds = array<i64: 1, 128>}, {transform_indices = @transform_3, window_bounds = array<i64: 1>}, {transform_indices = @transform_4, window_bounds = array<i64: 200, 1>}]} {
    %c0 = arith.constant 0 : index
    %c0_0 = arith.constant 0 : index
    %0 = vector.load %arg1[%c0, %c0_0] : memref<200x128xf32, #tpu.memory_space<vmem>>, vector<200x128xf32>
    %c0_1 = arith.constant 0 : index
    %c0_2 = arith.constant 0 : index
    %1 = vector.load %arg2[%c0_1, %c0_2] : memref<1x128xf32, #tpu.memory_space<vmem>>, vector<1x128xf32>
    %2 = vector.broadcast %1 : vector<1x128xf32> to vector<200x128xf32>
    %3 = arith.subf %0, %2 : vector<200x128xf32>
    %c0_3 = arith.constant 0 : index
    %c0_4 = arith.constant 0 : index
    %4 = vector.load %arg3[%c0_3, %c0_4] : memref<1x128xf32, #tpu.memory_space<vmem>>, vector<1x128xf32>
    %5 = vector.broadcast %4 : vector<1x128xf32> to vector<200x128xf32>
    %6 = arith.mulf %3, %5 : vector<200x128xf32>
    %7 = arith.mulf %6, %6 : vector<200x128xf32>
    %cst = arith.constant dense<0.000000e+00> : vector<200xf32>
    %8 = vector.multi_reduction <add>, %7, %cst [1] : vector<200x128xf32> to vector<200xf32>
    %9 = vector.shape_cast %8 : vector<200xf32> to vector<200x1xf32>
    %c0_5 = arith.constant 0 : index
    %10 = memref.load %arg4[%c0_5] : memref<1xf32, #tpu.memory_space<smem>>
    %11 = vector.broadcast %10 : f32 to vector<200x1xf32>
    %12 = arith.subf %11, %9 : vector<200x1xf32>
    %c0_6 = arith.constant 0 : index
    %c0_7 = arith.constant 0 : index
    %13 = vector.load %arg5[%c0_6, %c0_7] : memref<200x1xf32, #tpu.memory_space<vmem>>, vector<200x1xf32>
    tpu.vector_store %arg5[%c0_6, %c0_7], %12 {strides = array<i32>} : memref<200x1xf32, #tpu.memory_space<vmem>>, vector<200x1xf32>,
    return
  }
  func.func @transform_0(%arg0: i32) -> (i32, i32) {
    %c0_i32 = arith.constant 0 : i32
    %c0_i32_0 = arith.constant 0 : i32
    return %arg0, %c0_i32 : i32, i32
  }
  func.func @transform_1(%arg0: i32) -> (i32, i32) {
    %c0_i32 = arith.constant 0 : i32
    %c0_i32_0 = arith.constant 0 : i32
    %c0_i32_1 = arith.constant 0 : i32
    return %c0_i32, %c0_i32_0 : i32, i32
  }
  func.func @transform_2(%arg0: i32) -> (i32, i32) {
    %c0_i32 = arith.constant 0 : i32
    %c0_i32_0 = arith.constant 0 : i32
    %c0_i32_1 = arith.constant 0 : i32
    return %c0_i32, %c0_i32_0 : i32, i32
  }
  func.func @transform_3(%arg0: i32) -> i32 {
    %c0_i32 = arith.constant 0 : i32
    %c0_i32_0 = arith.constant 0 : i32
    return %c0_i32 : i32
  }
  func.func @transform_4(%arg0: i32) -> (i32, i32) {
    %c0_i32 = arith.constant 0 : i32
    %c0_i32_0 = arith.constant 0 : i32
    return %arg0, %c0_i32 : i32, i32
  }
}

</mosaic_0001>

<llo_original>
// kernel: independent_normal_log_prob.1
$region0: #{independent_normal_log_prob.1}
  #allocation0 [shape = 'u32[]', space=smem, size = 0x4, offset = 0x4, fixed_abs, tag = 'smem constant byte address 0x4 - core index']
  #allocation1 [shape = 'u32[72,128]{1,0:T(1,128)}', space=vmem, size = 0x9000, scoped, tag = 'internal scratch']
  #allocation2 [shape = 'f32[1]{0:T(128)S(6)}', space=smem, size = 0x200, scoped, tag = 'scoped memory for independent_normal_log_prob.1']
  %s0 = inlined_call_operand.hbm [shape: f32[200,128], index: 0, kind: input, shape index: {}]
  %s1 = inlined_call_operand.vmem [shape: f32[1,128], index: 1, kind: input, shape index: {}]
  %s2 = inlined_call_operand.vmem [shape: f32[1,128], index: 2, kind: input, shape index: {}]
  %s3 = inlined_call_operand.<no memory space> [shape: f32[1], index: 3, kind: input, shape index: {}]
  %s4 = inlined_call_operand.vmem [shape: f32[200,1], index: 4, kind: output, shape index: {}]
  %s5 = sld [smem:[#allocation0]]
  $region30: #{independent_normal_log_prob.1} parent=0
    _
  %s7 = ssub.s32 1, %s5
  %s8 = scalar_select 0, %s7, %s5
  %9 = sst [smem:[#allocation2]] %s3
  $region1: #{independent_normal_log_prob.1} parent=0
    #allocation3 [shape = 'u8[102400]{0}', space=vmem, size = 0x19000, scoped, tag = 'input window, operand 0, single buffered']
    #allocation4 [shape = 's32[1]{0}', space=sflag, size = 0x4, scoped, tag = 'scoped memory for independent_normal_log_prob.1']
    %10 = vsyncpa [#allocation4], 0
    // Predicated region
    $region2: #{independent_normal_log_prob.1} parent=1 // pred_check
      _
    $region3: #{independent_normal_log_prob.1} parent=1 // pred_check_branch
      %12 = sbr.rel (0) target = $region5
    $region4: #{independent_normal_log_prob.1} parent=1 // pred_region
      %14 = vsyncadd [#allocation4], 0
      %s15 = sshll.u32 %s0, 4
      %s16 = int_to_ptr.hbm [resolvable:$true] %s15
      %s17 = sshll.u32 [#allocation3], 4
      %s18 = int_to_ptr.vmem [resolvable:$true] %s17
      %23 = dma.hbm_to_vmem [thread:$0]  %s16, 3200, %s18, [#allocation4], 128, 128, 8
    $region5: #{independent_normal_log_prob.1} parent=1 // pred_fallthru
      _
    // Predicated region
    $region6: #{independent_normal_log_prob.1} parent=1 // pred_check
      _
    $region7: #{independent_normal_log_prob.1} parent=1 // pred_check_branch
      %25 = sbr.rel (0) target = $region9
    $region8: #{independent_normal_log_prob.1} parent=1 // pred_region
      _
    $region9: #{independent_normal_log_prob.1} parent=1 // pred_fallthru
      _
    // Predicated region
    $region10: #{independent_normal_log_prob.1} parent=1 // pred_check
      _
    $region11: #{independent_normal_log_prob.1} parent=1 // pred_check_branch
      %27 = sbr.rel (0) target = $region13
    $region12: #{independent_normal_log_prob.1} parent=1 // pred_region
      _
    $region13: #{independent_normal_log_prob.1} parent=1 // pred_fallthru
      _
    // Predicated region
    $region14: #{independent_normal_log_prob.1} parent=1 // pred_check
      _
    $region15: #{independent_normal_log_prob.1} parent=1 // pred_check_branch
      %29 = sbr.rel (0) target = $region17
    $region16: #{independent_normal_log_prob.1} parent=1 // pred_region
      _
    $region17: #{independent_normal_log_prob.1} parent=1 // pred_fallthru
      _
    // Predicated region
    $region18: #{independent_normal_log_prob.1} parent=1 // pred_check
      _
    $region19: #{independent_normal_log_prob.1} parent=1 // pred_check_branch
      %31 = sbr.rel (0) target = $region21
    $region20: #{independent_normal_log_prob.1} parent=1 // pred_region
      %33 = dma.done [#allocation4], 3200
    $region21: #{independent_normal_log_prob.1} parent=1 // pred_fallthru
      _
    %v34 = vld [vmem:[#allocation3] sm:$0xff]
    %v35 = vld [vmem:[#allocation3 + $0x8] sm:$0xff]
    %v36 = vld [vmem:[#allocation3 + $0x10] sm:$0xff]
    %v37 = vld [vmem:[#allocation3 + $0x18] sm:$0xff]
    %v38 = vld [vmem:[#allocation3 + $0x20] sm:$0xff]
    %v39 = vld [vmem:[#allocation3 + $0x28] sm:$0xff]
    %v40 = vld [vmem:[#allocation3 + $0x30] sm:$0xff]
    %v41 = vld [vmem:[#allocation3 + $0x38] sm:$0xff]
    %v42 = vld [vmem:[#allocation3 + $0x40] sm:$0xff]
    %v43 = vld [vmem:[#allocation3 + $0x48] sm:$0xff]
    %v44 = vld [vmem:[#allocation3 + $0x50] sm:$0xff]
    %v45 = vld [vmem:[#allocation3 + $0x58] sm:$0xff]
    %v46 = vld [vmem:[#allocation3 + $0x60] sm:$0xff]
    %v47 = vld [vmem:[#allocation3 + $0x68] sm:$0xff]
    %v48 = vld [vmem:[#allocation3 + $0x70] sm:$0xff]
    %v49 = vld [vmem:[#allocation3 + $0x78] sm:$0xff]
    %v50 = vld [vmem:[#allocation3 + $0x80] sm:$0xff]
    %v51 = vld [vmem:[#allocation3 + $0x88] sm:$0xff]
    %v52 = vld [vmem:[#allocation3 + $0x90] sm:$0xff]
    %v53 = vld [vmem:[#allocation3 + $0x98] sm:$0xff]
    %v54 = vld [vmem:[#allocation3 + $0xa0] sm:$0xff]
    %v55 = vld [vmem:[#allocation3 + $0xa8] sm:$0xff]
    %v56 = vld [vmem:[#allocation3 + $0xb0] sm:$0xff]
    %v57 = vld [vmem:[#allocation3 + $0xb8] sm:$0xff]
    %v58 = vld [vmem:[#allocation3 + $0xc0] sm:$0xff]
    %v59 = vld [vmem:[%s1] sm:$0x1]
    %v61 = vperm.slane %v59, 0
    %v63 = vsub.f32 %v34, %v61
    %v64 = vsub.f32 %v35, %v61
    %v65 = vsub.f32 %v36, %v61
    %v66 = vsub.f32 %v37, %v61
    %v67 = vsub.f32 %v38, %v61
    %v68 = vsub.f32 %v39, %v61
    %v69 = vsub.f32 %v40, %v61
    %v70 = vsub.f32 %v41, %v61
    %v71 = vsub.f32 %v42, %v61
    %v72 = vsub.f32 %v43, %v61
    %v73 = vsub.f32 %v44, %v61
    %v74 = vsub.f32 %v45, %v61
    %v75 = vsub.f32 %v46, %v61
    %v76 = vsub.f32 %v47, %v61
    %v77 = vsub.f32 %v48, %v61
    %v78 = vsub.f32 %v49, %v61
    %v79 = vsub.f32 %v50, %v61
    %v80 = vsub.f32 %v51, %v61
    %v81 = vsub.f32 %v52, %v61
    %v82 = vsub.f32 %v53, %v61
    %v83 = vsub.f32 %v54, %v61
    %v84 = vsub.f32 %v55, %v61
    %v85 = vsub.f32 %v56, %v61
    %v86 = vsub.f32 %v57, %v61
    %v87 = vsub.f32 %v58, %v61
    %v88 = vld [vmem:[%s2] sm:$0x1]
    %v90 = vperm.slane %v88, 0
    %v92 = vmul.f32 %v63, %v90
    %v93 = vmul.f32 %v64, %v90
    %v94 = vmul.f32 %v65, %v90
    %v95 = vmul.f32 %v66, %v90
    %v96 = vmul.f32 %v67, %v90
    %v97 = vmul.f32 %v68, %v90
    %v98 = vmul.f32 %v69, %v90
    %v99 = vmul.f32 %v70, %v90
    %v100 = vmul.f32 %v71, %v90
    %v101 = vmul.f32 %v72, %v90
    %v102 = vmul.f32 %v73, %v90
    %v103 = vmul.f32 %v74, %v90
    %v104 = vmul.f32 %v75, %v90
    %v105 = vmul.f32 %v76, %v90
    %v106 = vmul.f32 %v77, %v90
    %v107 = vmul.f32 %v78, %v90
    %v108 = vmul.f32 %v79, %v90
    %v109 = vmul.f32 %v80, %v90
    %v110 = vmul.f32 %v81, %v90
    %v111 = vmul.f32 %v82, %v90
    %v112 = vmul.f32 %v83, %v90
    %v113 = vmul.f32 %v84, %v90
    %v114 = vmul.f32 %v85, %v90
    %v115 = vmul.f32 %v86, %v90
    %v116 = vmul.f32 %v87, %v90
    %v117 = vmul.f32 %v92, %v92
    %v118 = vmul.f32 %v93, %v93
    %v119 = vmul.f32 %v94, %v94
    %v120 = vmul.f32 %v95, %v95
    %v121 = vmul.f32 %v96, %v96
    %v122 = vmul.f32 %v97, %v97
    %v123 = vmul.f32 %v98, %v98
    %v124 = vmul.f32 %v99, %v99
    %v125 = vmul.f32 %v100, %v100
    %v126 = vmul.f32 %v101, %v101
    %v127 = vmul.f32 %v102, %v102
    %v128 = vmul.f32 %v103, %v103
    %v129 = vmul.f32 %v104, %v104
    %v130 = vmul.f32 %v105, %v105
    %v131 = vmul.f32 %v106, %v106
    %v132 = vmul.f32 %v107, %v107
    %v133 = vmul.f32 %v108, %v108
    %v134 = vmul.f32 %v109, %v109
    %v135 = vmul.f32 %v110, %v110
    %v136 = vmul.f32 %v111, %v111
    %v137 = vmul.f32 %v112, %v112
    %v138 = vmul.f32 %v113, %v113
    %v139 = vmul.f32 %v114, %v114
    %v140 = vmul.f32 %v115, %v115
    %v141 = vmul.f32 %v116, %v116
    %142 = vadd.xlane.f32.xlu0 %v117
    %v143 = vpop.xlane.xlu0 %142
    %144 = vadd.xlane.f32.xlu0 %v118
    %v145 = vpop.xlane.xlu0 %144
    %146 = vadd.xlane.f32.xlu0 %v119
    %v147 = vpop.xlane.xlu0 %146
    %148 = vadd.xlane.f32.xlu0 %v120
    %v149 = vpop.xlane.xlu0 %148
    %150 = vadd.xlane.f32.xlu0 %v121
    %v151 = vpop.xlane.xlu0 %150
    %152 = vadd.xlane.f32.xlu0 %v122
    %v153 = vpop.xlane.xlu0 %152
    %154 = vadd.xlane.f32.xlu0 %v123
    %v155 = vpop.xlane.xlu0 %154
    %156 = vadd.xlane.f32.xlu0 %v124
    %v157 = vpop.xlane.xlu0 %156
    %158 = vadd.xlane.f32.xlu0 %v125
    %v159 = vpop.xlane.xlu0 %158
    %160 = vadd.xlane.f32.xlu0 %v126
    %v161 = vpop.xlane.xlu0 %160
    %162 = vadd.xlane.f32.xlu0 %v127
    %v163 = vpop.xlane.xlu0 %162
    %164 = vadd.xlane.f32.xlu0 %v128
    %v165 = vpop.xlane.xlu0 %164
    %166 = vadd.xlane.f32.xlu0 %v129
    %v167 = vpop.xlane.xlu0 %166
    %168 = vadd.xlane.f32.xlu0 %v130
    %v169 = vpop.xlane.xlu0 %168
    %170 = vadd.xlane.f32.xlu0 %v131
    %v171 = vpop.xlane.xlu0 %170
    %172 = vadd.xlane.f32.xlu0 %v132
    %v173 = vpop.xlane.xlu0 %172
    %174 = vadd.xlane.f32.xlu0 %v133
    %v175 = vpop.xlane.xlu0 %174
    %176 = vadd.xlane.f32.xlu0 %v134
    %v177 = vpop.xlane.xlu0 %176
    %178 = vadd.xlane.f32.xlu0 %v135
    %v179 = vpop.xlane.xlu0 %178
    %180 = vadd.xlane.f32.xlu0 %v136
    %v181 = vpop.xlane.xlu0 %180
    %182 = vadd.xlane.f32.xlu0 %v137
    %v183 = vpop.xlane.xlu0 %182
    %184 = vadd.xlane.f32.xlu0 %v138
    %v185 = vpop.xlane.xlu0 %184
    %186 = vadd.xlane.f32.xlu0 %v139
    %v187 = vpop.xlane.xlu0 %186
    %188 = vadd.xlane.f32.xlu0 %v140
    %v189 = vpop.xlane.xlu0 %188
    %190 = vadd.xlane.f32.xlu0 %v141
    %v191 = vpop.xlane.xlu0 %190
    %s192 = sld [smem:[#allocation2]]
    %v193 = vstv %s192
    %v194 = vsub.f32 %v193, %v143
    %v195 = vsub.f32 %v193, %v145
    %v196 = vsub.f32 %v193, %v147
    %v197 = vsub.f32 %v193, %v149
    %v198 = vsub.f32 %v193, %v151
    %v199 = vsub.f32 %v193, %v153
    %v200 = vsub.f32 %v193, %v155
    %v201 = vsub.f32 %v193, %v157
    %v202 = vsub.f32 %v193, %v159
    %v203 = vsub.f32 %v193, %v161
    %v204 = vsub.f32 %v193, %v163
    %v205 = vsub.f32 %v193, %v165
    %v206 = vsub.f32 %v193, %v167
    %v207 = vsub.f32 %v193, %v169
    %v208 = vsub.f32 %v193, %v171
    %v209 = vsub.f32 %v193, %v173
    %v210 = vsub.f32 %v193, %v175
    %v211 = vsub.f32 %v193, %v177
    %v212 = vsub.f32 %v193, %v179
    %v213 = vsub.f32 %v193, %v181
    %v214 = vsub.f32 %v193, %v183
    %v215 = vsub.f32 %v193, %v185
    %v216 = vsub.f32 %v193, %v187
    %v217 = vsub.f32 %v193, %v189
    %v218 = vsub.f32 %v193, %v191
    %vm219 = vcmask 7168
    %220 = vst.msk [vmem:[%s4] sm:$0xff] %vm219, %v194
    %221 = vst.msk [vmem:[%s4 + $0x8] sm:$0xff] %vm219, %v195
    %222 = vst.msk [vmem:[%s4 + $0x10] sm:$0xff] %vm219, %v196
    %223 = vst.msk [vmem:[%s4 + $0x18] sm:$0xff] %vm219, %v197
    %224 = vst.msk [vmem:[%s4 + $0x20] sm:$0xff] %vm219, %v198
    %225 = vst.msk [vmem:[%s4 + $0x28] sm:$0xff] %vm219, %v199
    %226 = vst.msk [vmem:[%s4 + $0x30] sm:$0xff] %vm219, %v200
    %227 = vst.msk [vmem:[%s4 + $0x38] sm:$0xff] %vm219, %v201
    %228 = vst.msk [vmem:[%s4 + $0x40] sm:$0xff] %vm219, %v202
    %229 = vst.msk [vmem:[%s4 + $0x48] sm:$0xff] %vm219, %v203
    %230 = vst.msk [vmem:[%s4 + $0x50] sm:$0xff] %vm219, %v204
    %231 = vst.msk [vmem:[%s4 + $0x58] sm:$0xff] %vm219, %v205
    %232 = vst.msk [vmem:[%s4 + $0x60] sm:$0xff] %vm219, %v206
    %233 = vst.msk [vmem:[%s4 + $0x68] sm:$0xff] %vm219, %v207
    %234 = vst.msk [vmem:[%s4 + $0x70] sm:$0xff] %vm219, %v208
    %235 = vst.msk [vmem:[%s4 + $0x78] sm:$0xff] %vm219, %v209
    %236 = vst.msk [vmem:[%s4 + $0x80] sm:$0xff] %vm219, %v210
    %237 = vst.msk [vmem:[%s4 + $0x88] sm:$0xff] %vm219, %v211
    %238 = vst.msk [vmem:[%s4 + $0x90] sm:$0xff] %vm219, %v212
    %239 = vst.msk [vmem:[%s4 + $0x98] sm:$0xff] %vm219, %v213
    %240 = vst.msk [vmem:[%s4 + $0xa0] sm:$0xff] %vm219, %v214
    %241 = vst.msk [vmem:[%s4 + $0xa8] sm:$0xff] %vm219, %v215
    %242 = vst.msk [vmem:[%s4 + $0xb0] sm:$0xff] %vm219, %v216
    %243 = vst.msk [vmem:[%s4 + $0xb8] sm:$0xff] %vm219, %v217
    %244 = vst.msk [vmem:[%s4 + $0xc0] sm:$0xff] %vm219, %v218
    // Predicated region
    $region22: #{independent_normal_log_prob.1} parent=1 // pred_check
      _
    $region23: #{independent_normal_log_prob.1} parent=1 // pred_check_branch
      %246 = sbr.rel (0) target = $region25
    $region24: #{independent_normal_log_prob.1} parent=1 // pred_region
      _
    $region25: #{independent_normal_log_prob.1} parent=1 // pred_fallthru
      _
    // Predicated region
    $region26: #{independent_normal_log_prob.1} parent=1 // pred_check
      _
    $region27: #{independent_normal_log_prob.1} parent=1 // pred_check_branch
      %248 = sbr.rel (0) target = $region29
    $region28: #{independent_normal_log_prob.1} parent=1 // pred_region
      _
    $region29: #{independent_normal_log_prob.1} parent=1 // pred_fallthru
      _
    %249 = vsyncpa [#allocation4], 1

</llo_original>
